<compile_context>
chip_gen: v6e
topology: v6e:2x2x1
jax: 0.10.0
libtpu: 0.0.40
codegen_flags: <defaults>
</compile_context>

<pallas_src>
from functools import partial

import numpy as np
import jax
import jax.numpy as jnp
from jax.experimental import pallas as pl
from jax.experimental.pallas import tpu as pltpu


# ----------------------------------------------------------------------------
# channel split for method='equal_params' (identical math to the torch module)
# ----------------------------------------------------------------------------
def equal_params_channels(out_ch, k):
    groups = len(k)
    b = [out_ch] + [0] * groups
    a = np.eye(groups + 1, groups, k=-1)
    a -= np.roll(a, 1, axis=1)
    a *= np.array(k) ** 2
    a[0] = 1
    ch = np.linalg.lstsq(a, np.array(b, dtype=np.float64), rcond=None)[0]
    return ch.round().astype(int)


# ----------------------------------------------------------------------------
# one-time (per spatial width) weight prep: zero-embedded 7x7 fusion +
# block-Toeplitz expansion along W, with the contraction axis padded to a
# multiple of 128 lanes and dy folded into K.  Pure numpy -> no per-call XLA.
# ----------------------------------------------------------------------------
def build_fused_weights(weights_oihw_np, biases_np, k, in_ch, W):
    KK = max(k)
    pad = KK // 2
    Wp = W + 2 * pad
    Cout = int(sum(w.shape[0] for w in weights_oihw_np))

    lanes = Wp * in_ch
    Kc = ((lanes + 127) // 128) * 128          # contraction depth per dy, lane-aligned
    assert Kc % in_ch == 0, "in_ch must divide the padded lane count"
    Wp_ext = Kc // in_ch                       # padded-activation columns per row

    # fuse branch weights into one KKxKK HWIO kernel (center-embedded; zero taps exact)
    wf = np.zeros((KK, KK, in_ch, Cout), np.float32)
    off = 0
    for w_oihw, kk in zip(weights_oihw_np, k):
        o = (KK - kk) // 2                     # pad=kk//2 branch -> pad=KK//2 fused
        co = int(w_oihw.shape[0])
        wf[o:o + kk, o:o + kk, :, off:off + co] = np.transpose(w_oihw, (2, 3, 1, 0))
        off += co

    # block-Toeplitz along W, dy folded into K:
    #   T[dy*Kc + win*Cin + ci, w*Cout + co] = wf[dy, win-w, ci, co] if 0<=win-w<KK else 0
    dx = np.arange(Wp_ext)[:, None] - np.arange(W)[None, :]        # (Wp_ext, W)
    valid = ((dx >= 0) & (dx < KK)).astype(np.float32)
    dxc = np.clip(dx, 0, KK - 1)
    t = wf[:, dxc]                                                 # (KK, Wp_ext, W, Cin, Cout)
    t = t * valid[None, :, :, None, None]
    t = np.transpose(t, (0, 1, 3, 2, 4)).reshape(KK * Kc, W * Cout)

    bias_cat = np.concatenate([np.asarray(b, np.float32) for b in biases_np])
    bias_tiled = np.tile(bias_cat, W).reshape(1, W * Cout)

    return jnp.asarray(t, jnp.bfloat16), jnp.asarray(bias_tiled, jnp.float32)


# ----------------------------------------------------------------------------
# jitted forward: activation layout -> one pallas_call -> output layout
# ----------------------------------------------------------------------------
@partial(jax.jit, static_argnums=(3,))
def mixconv2d_forward(x_nchw, t_fused, bias_tiled, kk):
    N, Cin, H, W = x_nchw.shape
    pad = kk // 2
    Hp = H + 2 * pad
    Wp = W + 2 * pad
    KKKc, WCout = t_fused.shape
    Kc = KKKc // kk
    Wp_ext = Kc // Cin
    Cout = WCout // W

    # activation prep (single fused chain): NCHW->NHWC, bf16, pad H by `pad`,
    # pad W by (pad, pad + extra) so Wp_ext*Cin == Kc (extra zeros are exact).
    x_nhwc = jnp.transpose(x_nchw, (0, 2, 3, 1)).astype(jnp.bfloat16)
    xp = jnp.pad(x_nhwc, ((0, 0), (pad, pad), (pad, pad + (Wp_ext - Wp)), (0, 0)))
    xp = xp.reshape(N, Hp, Kc)

    def kernel(xp_ref, t_ref, b_ref, o_ref, cols_ref):
        # xp_ref:   (1, Hp, Kc)      bf16   padded activation, (W, Cin) on lanes
        # t_ref:    (KK*Kc, W*Cout)  bf16   block-Toeplitz fused weights, dy in K
        # b_ref:    (1, W*Cout)      f32    bias tiled over W
        # o_ref:    (1, H, W*Cout)   bf16
        # cols_ref: (H, KK*Kc)       bf16   VMEM scratch (im2col along H)
        for dy in range(kk):                           # static unroll, kk == 7
            cols_ref[:, dy * Kc:(dy + 1) * Kc] = xp_ref[0, dy:dy + H, :]
        acc = jnp.dot(cols_ref[...], t_ref[...],
                      preferred_element_type=jnp.float32)
        o_ref[0] = (acc + b_ref[0]).astype(o_ref.dtype)

    y_flat = pl.pallas_call(
        kernel,
        out_shape=jax.ShapeDtypeStruct((N, H, WCout), jnp.bfloat16),
        grid_spec=pltpu.PrefetchScalarGridSpec(
            num_scalar_prefetch=0,
            grid=(N,),
            in_specs=[
                pl.BlockSpec((1, Hp, Kc), lambda n: (n, 0, 0)),
                pl.BlockSpec((KKKc, WCout), lambda n: (0, 0)),     # grid-invariant
                pl.BlockSpec((1, WCout), lambda n: (0, 0)),        # grid-invariant
            ],
            out_specs=pl.BlockSpec((1, H, WCout), lambda n: (n, 0, 0)),
            scratch_shapes=[pltpu.VMEM((H, kk * Kc), jnp.bfloat16)],
        ),
        compiler_params=pltpu.CompilerParams(
            dimension_semantics=("parallel",)),
    )(xp, t_fused, bias_tiled)

    # back to the module's NCHW / f32 contract
    y = y_flat.reshape(N, H, W, Cout)
    return jnp.transpose(y, (0, 3, 1, 2)).astype(jnp.float32)


# ----------------------------------------------------------------------------
# MixConv2d module (parameters held as plain arrays, init'd deterministically)
# ----------------------------------------------------------------------------
class MixConv2dPallas:
    def __init__(self, in_ch, out_ch, k=(3, 5, 7), key=None):
        self.k = tuple(k)
        self.in_ch = in_ch
        self.ch = equal_params_channels(out_ch, k)
        key = jax.random.PRNGKey(0) if key is None else key
        self.weights = []   # OIHW (PyTorch convention)
        self.biases = []
        for g, kk in enumerate(self.k):
            key, kw, kb = jax.random.split(key, 3)
            cout = int(self.ch[g])
            w = jax.random.normal(kw, (cout, in_ch, kk, kk), jnp.float32) * 0.1
            b = jax.random.normal(kb, (cout,), jnp.float32) * 0.1
            self.weights.append(w)
            self.biases.append(b)
        self._fused_cache = {}   # keyed by spatial width W

    def _fused(self, W):
        if W not in self._fused_cache:
            w_np = [np.asarray(w) for w in self.weights]
            b_np = [np.asarray(b) for b in self.biases]
            self._fused_cache[W] = build_fused_weights(w_np, b_np, self.k, self.in_ch, W)
        return self._fused_cache[W]

    def __call__(self, x_nchw):
        t_fused, bias_tiled = self._fused(int(x_nchw.shape[3]))
        return mixconv2d_forward(x_nchw, t_fused, bias_tiled, max(self.k))


# ----------------------------------------------------------------------------
# reference (pure XLA conv, same bf16 input/weight quantization, f32 accum)
# ----------------------------------------------------------------------------
def _reference(module, x_nchw):
    xb = x_nchw.astype(jnp.bfloat16)
    outs = []
    for g, kk in enumerate(module.k):
        padb = kk // 2
        wb = module.weights[g].astype(jnp.bfloat16)
        o = jax.lax.conv_general_dilated(
            xb, wb, window_strides=(1, 1),
            padding=[(padb, padb), (padb, padb)],
            dimension_numbers=('NCHW', 'OIHW', 'NCHW'),
            preferred_element_type=jnp.float32)
        outs.append(o + module.biases[g][None, :, None, None])
    return jnp.concatenate(outs, axis=1)


if __name__ == "__main__":
    N, Cin, Hs, Ws = 2, 4, 16, 16
    out_ch = 8

    key = jax.random.PRNGKey(0)
    key, kx = jax.random.split(key)
    x = jax.random.normal(kx, (N, Cin, Hs, Ws), jnp.float32)

    module = MixConv2dPallas(Cin, out_ch, k=(3, 5, 7), key=key)

    y = jax.block_until_ready(module(x))
    y_ref = jax.block_until_ready(_reference(module, x))

    assert y.shape == (N, out_ch, Hs, Ws), y.shape
    err = float(np.max(np.abs(np.asarray(y) - np.asarray(y_ref))))
    assert np.allclose(np.asarray(y), np.asarray(y_ref), atol=2e-2, rtol=2e-2), err

    print("KERNEL_OK")
</pallas_src>

<mosaic_0001>
module attributes {stable_mosaic.version = 11 : i64} {
  func.func @kernel(%arg0: i32, %arg1: memref<1x22x128xbf16, #tpu.memory_space<vmem>>, %arg2: memref<896x128xbf16, #tpu.memory_space<vmem>>, %arg3: memref<1x128xf32, #tpu.memory_space<vmem>>, %arg4: memref<1x16x128xbf16, #tpu.memory_space<vmem>>, %arg5: memref<16x896xbf16, #tpu.memory_space<vmem>>) attributes {dimension_semantics = [#tpu.dimension_semantics<parallel>], iteration_bounds = array<i64: 2>, scalar_prefetch = 0 : i64, scratch_operands = 1 : i64, tpu.core_type = #tpu.core_type<tc>, window_params = [{transform_indices = @transform_0, window_bounds = array<i64: 1, 22, 128>}, {pipeline_mode = #tpu.pipeline_mode<synchronous>, transform_indices = @transform_1, window_bounds = array<i64: 896, 128>}, {pipeline_mode = #tpu.pipeline_mode<synchronous>, transform_indices = @transform_2, window_bounds = array<i64: 1, 128>}, {transform_indices = @transform_3, window_bounds = array<i64: 1, 16, 128>}]} {
    %c0 = arith.constant 0 : index
    %c0_0 = arith.constant 0 : index
    %c0_1 = arith.constant 0 : index
    %0 = vector.load %arg1[%c0, %c0_0, %c0_1] : memref<1x22x128xbf16, #tpu.memory_space<vmem>>, vector<1x16x128xbf16>
    %1 = vector.shape_cast %0 : vector<1x16x128xbf16> to vector<16x128xbf16>
    %c0_2 = arith.constant 0 : index
    %c0_3 = arith.constant 0 : index
    %2 = vector.load %arg5[%c0_2, %c0_3] : memref<16x896xbf16, #tpu.memory_space<vmem>>, vector<16x128xbf16>
    tpu.vector_store %arg5[%c0_2, %c0_3], %1 {strides = array<i32>} : memref<16x896xbf16, #tpu.memory_space<vmem>>, vector<16x128xbf16>,
    %c0_4 = arith.constant 0 : index
    %c1 = arith.constant 1 : index
    %c0_5 = arith.constant 0 : index
    %3 = vector.load %arg1[%c0_4, %c1, %c0_5] : memref<1x22x128xbf16, #tpu.memory_space<vmem>>, vector<1x16x128xbf16>
    %4 = vector.shape_cast %3 : vector<1x16x128xbf16> to vector<16x128xbf16>
    %c0_6 = arith.constant 0 : index
    %c128 = arith.constant 128 : index
    %5 = vector.load %arg5[%c0_6, %c128] : memref<16x896xbf16, #tpu.memory_space<vmem>>, vector<16x128xbf16>
    tpu.vector_store %arg5[%c0_6, %c128], %4 {strides = array<i32>} : memref<16x896xbf16, #tpu.memory_space<vmem>>, vector<16x128xbf16>,
    %c0_7 = arith.constant 0 : index
    %c2 = arith.constant 2 : index
    %c0_8 = arith.constant 0 : index
    %6 = vector.load %arg1[%c0_7, %c2, %c0_8] : memref<1x22x128xbf16, #tpu.memory_space<vmem>>, vector<1x16x128xbf16>
    %7 = vector.shape_cast %6 : vector<1x16x128xbf16> to vector<16x128xbf16>
    %c0_9 = arith.constant 0 : index
    %c256 = arith.constant 256 : index
    %8 = vector.load %arg5[%c0_9, %c256] : memref<16x896xbf16, #tpu.memory_space<vmem>>, vector<16x128xbf16>
    tpu.vector_store %arg5[%c0_9, %c256], %7 {strides = array<i32>} : memref<16x896xbf16, #tpu.memory_space<vmem>>, vector<16x128xbf16>,
    %c0_10 = arith.constant 0 : index
    %c3 = arith.constant 3 : index
    %c0_11 = arith.constant 0 : index
    %9 = vector.load %arg1[%c0_10, %c3, %c0_11] : memref<1x22x128xbf16, #tpu.memory_space<vmem>>, vector<1x16x128xbf16>
    %10 = vector.shape_cast %9 : vector<1x16x128xbf16> to vector<16x128xbf16>
    %c0_12 = arith.constant 0 : index
    %c384 = arith.constant 384 : index
    %11 = vector.load %arg5[%c0_12, %c384] : memref<16x896xbf16, #tpu.memory_space<vmem>>, vector<16x128xbf16>
    tpu.vector_store %arg5[%c0_12, %c384], %10 {strides = array<i32>} : memref<16x896xbf16, #tpu.memory_space<vmem>>, vector<16x128xbf16>,
    %c0_13 = arith.constant 0 : index
    %c4 = arith.constant 4 : index
    %c0_14 = arith.constant 0 : index
    %12 = vector.load %arg1[%c0_13, %c4, %c0_14] : memref<1x22x128xbf16, #tpu.memory_space<vmem>>, vector<1x16x128xbf16>
    %13 = vector.shape_cast %12 : vector<1x16x128xbf16> to vector<16x128xbf16>
    %c0_15 = arith.constant 0 : index
    %c512 = arith.constant 512 : index
    %14 = vector.load %arg5[%c0_15, %c512] : memref<16x896xbf16, #tpu.memory_space<vmem>>, vector<16x128xbf16>
    tpu.vector_store %arg5[%c0_15, %c512], %13 {strides = array<i32>} : memref<16x896xbf16, #tpu.memory_space<vmem>>, vector<16x128xbf16>,
    %c0_16 = arith.constant 0 : index
    %c5 = arith.constant 5 : index
    %c0_17 = arith.constant 0 : index
    %15 = vector.load %arg1[%c0_16, %c5, %c0_17] : memref<1x22x128xbf16, #tpu.memory_space<vmem>>, vector<1x16x128xbf16>
    %16 = vector.shape_cast %15 : vector<1x16x128xbf16> to vector<16x128xbf16>
    %c0_18 = arith.constant 0 : index
    %c640 = arith.constant 640 : index
    %17 = vector.load %arg5[%c0_18, %c640] : memref<16x896xbf16, #tpu.memory_space<vmem>>, vector<16x128xbf16>
    tpu.vector_store %arg5[%c0_18, %c640], %16 {strides = array<i32>} : memref<16x896xbf16, #tpu.memory_space<vmem>>, vector<16x128xbf16>,
    %c0_19 = arith.constant 0 : index
    %c6 = arith.constant 6 : index
    %c0_20 = arith.constant 0 : index
    %18 = vector.load %arg1[%c0_19, %c6, %c0_20] : memref<1x22x128xbf16, #tpu.memory_space<vmem>>, vector<1x16x128xbf16>
    %19 = vector.shape_cast %18 : vector<1x16x128xbf16> to vector<16x128xbf16>
    %c0_21 = arith.constant 0 : index
    %c768 = arith.constant 768 : index
    %20 = vector.load %arg5[%c0_21, %c768] : memref<16x896xbf16, #tpu.memory_space<vmem>>, vector<16x128xbf16>
    tpu.vector_store %arg5[%c0_21, %c768], %19 {strides = array<i32>} : memref<16x896xbf16, #tpu.memory_space<vmem>>, vector<16x128xbf16>,
    %c0_22 = arith.constant 0 : index
    %c0_23 = arith.constant 0 : index
    %21 = vector.load %arg5[%c0_22, %c0_23] : memref<16x896xbf16, #tpu.memory_space<vmem>>, vector<16x896xbf16>
    %c0_24 = arith.constant 0 : index
    %c0_25 = arith.constant 0 : index
    %22 = vector.load %arg2[%c0_24, %c0_25] : memref<896x128xbf16, #tpu.memory_space<vmem>>, vector<896x128xbf16>
    %cst = arith.constant dense<0.000000e+00> : vector<16x128xf32>
    %23 = tpu.matmul %21, %22, %cst {dimension_numbers = #tpu.dot_dimension_numbers<[1], [0], [0], [1], [0, 0, 1, 1], [], []>} : vector<16x896xbf16>, vector<896x128xbf16>, vector<16x128xf32> -> vector<16x128xf32>
    %c0_26 = arith.constant 0 : index
    %c0_27 = arith.constant 0 : index
    %24 = vector.load %arg3[%c0_26, %c0_27] : memref<1x128xf32, #tpu.memory_space<vmem>>, vector<1x128xf32>
    %25 = vector.shape_cast %24 : vector<1x128xf32> to vector<128xf32>
    %26 = vector.shape_cast %25 : vector<128xf32> to vector<1x128xf32>
    %27 = vector.broadcast %26 : vector<1x128xf32> to vector<16x128xf32>
    %28 = arith.addf %23, %27 : vector<16x128xf32>
    %29 = arith.truncf %28 : vector<16x128xf32> to vector<16x128xbf16>
    %c0_28 = arith.constant 0 : index
    %c0_29 = arith.constant 0 : index
    %c0_30 = arith.constant 0 : index
    %30 = vector.load %arg4[%c0_28, %c0_29, %c0_30] : memref<1x16x128xbf16, #tpu.memory_space<vmem>>, vector<1x16x128xbf16>
    %31 = vector.shape_cast %30 : vector<1x16x128xbf16> to vector<16x128xbf16>
    %32 = vector.shape_cast %29 : vector<16x128xbf16> to vector<1x16x128xbf16>
    tpu.vector_store %arg4[%c0_28, %c0_29, %c0_30], %32 {strides = array<i32>} : memref<1x16x128xbf16, #tpu.memory_space<vmem>>, vector<1x16x128xbf16>,
    return
  }
  func.func @transform_0(%arg0: i32) -> (i32, i32, i32) {
    %c0_i32 = arith.constant 0 : i32
    %c0_i32_0 = arith.constant 0 : i32
    %c0_i32_1 = arith.constant 0 : i32
    return %arg0, %c0_i32, %c0_i32_0 : i32, i32, i32
  }
  func.func @transform_1(%arg0: i32) -> (i32, i32) {
    %c0_i32 = arith.constant 0 : i32
    %c0_i32_0 = arith.constant 0 : i32
    %c0_i32_1 = arith.constant 0 : i32
    return %c0_i32, %c0_i32_0 : i32, i32
  }
  func.func @transform_2(%arg0: i32) -> (i32, i32) {
    %c0_i32 = arith.constant 0 : i32
    %c0_i32_0 = arith.constant 0 : i32
    %c0_i32_1 = arith.constant 0 : i32
    return %c0_i32, %c0_i32_0 : i32, i32
  }
  func.func @transform_3(%arg0: i32) -> (i32, i32, i32) {
    %c0_i32 = arith.constant 0 : i32
    %c0_i32_0 = arith.constant 0 : i32
    %c0_i32_1 = arith.constant 0 : i32
    return %arg0, %c0_i32, %c0_i32_0 : i32, i32, i32
  }
}

</mosaic_0001>

<llo_original>
// kernel: mixconv2d_forward.1
$region0: #{mixconv2d_forward.1}
  #allocation0 [shape = 'u32[]', space=smem, size = 0x4, offset = 0x4, fixed_abs, tag = 'smem constant byte address 0x4 - core index']
  #allocation1 [shape = 'u32[144,128]{1,0:T(1,128)}', space=vmem, size = 0x12000, scoped, tag = 'internal scratch']
  #allocation2 [shape = 'bf16[16,896]{1,0:T(8,128)(2,1)}', space=vmem, size = 0x7000, scoped, tag = 'scratch operand']
  %s0 = inlined_call_operand.vmem [shape: bf16[2,22,128], index: 0, kind: input, shape index: {}]
  %s1 = inlined_call_operand.vmem [shape: bf16[896,128], index: 1, kind: input, shape index: {}]
  %s2 = inlined_call_operand.vmem [shape: f32[1,128], index: 2, kind: input, shape index: {}]
  %s3 = inlined_call_operand.vmem [shape: bf16[2,16,128], index: 3, kind: output, shape index: {}]
  %s4 = sld [smem:[#allocation0]]
  $region45: #{mixconv2d_forward.1} parent=0
    _
  %s6 = ssub.s32 1, %s4
  %s7 = scalar_select 0, %s6, %s4
  loop: start=0, step=1, limit=4
  $region2: #{mixconv2d_forward.1} parent=0 // loop_pre_header
    _
  $region3: #{mixconv2d_forward.1} parent=0 // loop_header
    %s9 = sphi 0, %s13
    %p10 = scmp.ge.s32.totalorder %s9, 4
    %s19 = sphi 0, %s21
    %s22 = sphi 0, %s19
    %s23 = sphi 0, %s22
    %s39 = sphi 0, %s23
    %s43 = sphi 0, %s43
    %s45 = sphi 0, %s43
    %s46 = sphi 0, %s45
    %s60 = sphi 0, %s46
    %s64 = sphi 0, %s64
    %s66 = sphi 0, %s64
    %s67 = sphi 0, %s66
    %s81 = sphi 0, %s67
    %s87 = sphi 0, %s89
    %s90 = sphi 0, %s87
    %s91 = sphi 0, %s90
    %s107 = sphi 0, %s91
  $region4: #{mixconv2d_forward.1} parent=0 // loop_header_branch
    %12 = sbr.rel (%p10) target = $region8
  $region5: #{mixconv2d_forward.1} parent=0 // loop_body
    %s14 = ssub.s32 %s9, 1
    %s15 = ssub.s32 %s9, 2
    %s16 = sadd.s32 %s9, 1
    %s17 = ssub.s32 %s9, %s16
    %p18 = scmp.eq.s32.totalorder %s17, 0
    %s20 = sadd.s32 %s19, 1
    %s21 = scalar_select %p18, %s19, %s20
    %p24 = pneg %p18
    %p25 = scmp.eq.s32.totalorder %s9, 1
    %p26 = por %p24, %p25
    %p27 = scmp.ne.s32.totalorder %s19, %s22
    %p28 = scmp.eq.s32.totalorder %s9, 0
    %p29 = por %p27, %p28
    %p30 = scmp.ne.s32.totalorder %s19, %s22
    %p31 = scmp.eq.s32.totalorder %s14, 1
    %p32 = por %p30, %p31
    %p33 = scmp.ne.s32.totalorder %s22, %s23
    %p34 = scmp.eq.s32.totalorder %s14, 0
    %p35 = por %p33, %p34
    %p36 = scmp.ne.s32.totalorder %s22, %s23
    %p37 = scmp.eq.s32.totalorder %s15, 1
    %p38 = por %p36, %p37
    %p40 = scmp.ne.s32.totalorder %s23, %s39
    %p41 = scmp.eq.s32.totalorder %s15, 0
    %p42 = por %p40, %p41
    %s44 = sadd.s32 %s43, 1
    %p47 = scmp.eq.s32.totalorder %s9, 1
    %p48 = scmp.ne.s32.totalorder %s43, %s45
    %p49 = scmp.eq.s32.totalorder %s9, 0
    %p50 = por %p48, %p49
    %p51 = scmp.ne.s32.totalorder %s43, %s45
    %p52 = scmp.eq.s32.totalorder %s14, 1
    %p53 = por %p51, %p52
    %p54 = scmp.ne.s32.totalorder %s45, %s46
    %p55 = scmp.eq.s32.totalorder %s14, 0
    %p56 = por %p54, %p55
    %p57 = scmp.ne.s32.totalorder %s45, %s46
    %p58 = scmp.eq.s32.totalorder %s15, 1
    %p59 = por %p57, %p58
    %p61 = scmp.ne.s32.totalorder %s46, %s60
    %p62 = scmp.eq.s32.totalorder %s15, 0
    %p63 = por %p61, %p62
    %s65 = sadd.s32 %s64, 1
    %p68 = scmp.eq.s32.totalorder %s9, 1
    %p69 = scmp.ne.s32.totalorder %s64, %s66
    %p70 = scmp.eq.s32.totalorder %s9, 0
    %p71 = por %p69, %p70
    %p72 = scmp.ne.s32.totalorder %s64, %s66
    %p73 = scmp.eq.s32.totalorder %s14, 1
    %p74 = por %p72, %p73
    %p75 = scmp.ne.s32.totalorder %s66, %s67
    %p76 = scmp.eq.s32.totalorder %s14, 0
    %p77 = por %p75, %p76
    %p78 = scmp.ne.s32.totalorder %s66, %s67
    %p79 = scmp.eq.s32.totalorder %s15, 1
    %p80 = por %p78, %p79
    %p82 = scmp.ne.s32.totalorder %s67, %s81
    %p83 = scmp.eq.s32.totalorder %s15, 0
    %p84 = por %p82, %p83
    %s85 = ssub.s32 %s9, %s16
    %p86 = scmp.eq.s32.totalorder %s85, 0
    %s88 = sadd.s32 %s87, 1
    %s89 = scalar_select %p86, %s87, %s88
    %p92 = pneg %p86
    %p93 = scmp.eq.s32.totalorder %s9, 1
    %p94 = por %p92, %p93
    %p95 = scmp.ne.s32.totalorder %s87, %s90
    %p96 = scmp.eq.s32.totalorder %s9, 0
    %p97 = por %p95, %p96
    %p98 = scmp.ne.s32.totalorder %s87, %s90
    %p99 = scmp.eq.s32.totalorder %s14, 1
    %p100 = por %p98, %p99
    %p101 = scmp.ne.s32.totalorder %s90, %s91
    %p102 = scmp.eq.s32.totalorder %s14, 0
    %p103 = por %p101, %p102
    %p104 = scmp.ne.s32.totalorder %s90, %s91
    %p105 = scmp.eq.s32.totalorder %s15, 1
    %p106 = por %p104, %p105
    %p108 = scmp.ne.s32.totalorder %s91, %s107
    %p109 = scmp.eq.s32.totalorder %s15, 0
    %p110 = por %p108, %p109
    %p111 = scmp.le.s32.totalorder 1, %s9
    %p112 = scmp.lt.s32.totalorder %s9, 3
    %p113 = pnand %p111, %p112
    %p114 = pneg %p113
    // Predicated region
    $region9: #{mixconv2d_forward.1} parent=5 // pred_check
      _
    $region10: #{mixconv2d_forward.1} parent=5 // pred_check_branch
      %116 = sbr.rel (%p113) target = $region12
    $region11: #{mixconv2d_forward.1} parent=5 // pred_region
      %s117 = ssub.s32 %s9, 1
      // Predicated region
      $region13: #{mixconv2d_forward.1} parent=11 // pred_check
        %p118 = pneg %p56
      $region14: #{mixconv2d_forward.1} parent=11 // pred_check_branch
        %120 = sbr.rel (%p118) target = $region16
      $region15: #{mixconv2d_forward.1} parent=11 // pred_region
        _
      $region16: #{mixconv2d_forward.1} parent=11 // pred_fallthru
        _
      // Predicated region
      $region17: #{mixconv2d_forward.1} parent=11 // pred_check
        %p121 = pneg %p77
      $region18: #{mixconv2d_forward.1} parent=11 // pred_check_branch
        %123 = sbr.rel (%p121) target = $region20
      $region19: #{mixconv2d_forward.1} parent=11 // pred_region
        _
      $region20: #{mixconv2d_forward.1} parent=11 // pred_fallthru
        _
    $region12: #{mixconv2d_forward.1} parent=5 // pred_fallthru
      _
    %p124 = scmp.lt.s32.totalorder %s9, 2
    // Predicated region
    $region21: #{mixconv2d_forward.1} parent=5 // pred_check
      %p125 = pneg %p124
    $region22: #{mixconv2d_forward.1} parent=5 // pred_check_branch
      %127 = sbr.rel (%p125) target = $region24
    $region23: #{mixconv2d_forward.1} parent=5 // pred_region
      // Predicated region
      $region25: #{mixconv2d_forward.1} parent=23 // pred_check
        %p128 = pneg %p29
      $region26: #{mixconv2d_forward.1} parent=23 // pred_check_branch
        %130 = sbr.rel (%p128) target = $region28
      $region27: #{mixconv2d_forward.1} parent=23 // pred_region
        %p131 = scmp.lt.s32.totalorder %s9, 1
        %s132 = scalar_select %p131, %s9, 1
        %s133 = smul.addr %s132, 3
        %s134 = smul.addr %s133, 4
        %s135 = scalar_lea.vmem %s0, %s134
      $region28: #{mixconv2d_forward.1} parent=23 // pred_fallthru
        _
    $region24: #{mixconv2d_forward.1} parent=5 // pred_fallthru
      _
    %p136 = scmp.le.s32.totalorder 1, %s9
    %p137 = scmp.lt.s32.totalorder %s9, 3
    %p138 = pnand %p136, %p137
    %p139 = pneg %p138
    // Predicated region
    $region29: #{mixconv2d_forward.1} parent=5 // pred_check
      _
    $region30: #{mixconv2d_forward.1} parent=5 // pred_check_branch
      %141 = sbr.rel (%p138) target = $region32
    $region31: #{mixconv2d_forward.1} parent=5 // pred_region
      %s142 = ssub.s32 %s9, 1
      %p143 = scmp.lt.s32.totalorder %s14, 1
      %s144 = scalar_select %p143, %s14, 1
      %s145 = smul.addr %s144, 3
      %s146 = smul.addr %s145, 4
      %s147 = scalar_lea.vmem %s0, %s146
      %p148 = pneg %p35
      %p149 = pneg %p32
      %p150 = pneg %p56
      %p151 = pneg %p53
      %p152 = pneg %p77
      %p153 = pneg %p74
      %p154 = pneg %p103
      %p155 = pneg %p100
      %p156 = scmp.lt.s32.totalorder %s14, 1
      %s157 = scalar_select %p156, %s14, 1
      %s158 = smul.addr %s157, 2
      %s159 = smul.addr %s158, 4
      %s160 = scalar_lea.vmem %s3, %s159
      %p161 = scmp.lt.s32.totalorder %s14, 1
      %s162 = scalar_select %p161, %s14, 1
      %s163 = smul.addr %s162, 3
      %s164 = smul.addr %s163, 4
      %s165 = scalar_lea.vmem %s0, %s164
      %p166 = scmp.lt.s32.totalorder %s14, 1
      %s167 = scalar_select %p166, %s14, 1
      %s168 = smul.addr %s167, 2
      %s169 = smul.addr %s168, 4
      %s170 = scalar_lea.vmem %s3, %s169
      %v172 = vld [vmem:[%s165] sm:$0xf]
      %v173 = vld [vmem:[%s165 + $0x4] sm:$0xf]
      %174 = vst [vmem:[#allocation2] sm:$0xf] %v172
      %175 = vst [vmem:[#allocation2 + $0x1c] sm:$0xf] %v173
      %v176 = vld [vmem:[%s165] sm:$0xf]
      %v177 = vld [vmem:[%s165 + $0x4] sm:$0xf]
      %v178 = vld [vmem:[%s165 + $0x8] sm:$0x1]
      %vm179 = vsmask.f32 3328
      %vm180 = vsmask.f32 7440
      %vm181 = vmor %vm179, %vm180
      %v183 = vshrl.u32 %v176, 16
      %v185 = vrot.slane %v183, 4
      %v186 = vshll.u32 %v176, 16
      %v188 = vrot.slane %v186, 5
      %v189 = vor.u32 %v185, %v188
      %v190 = vrot.slane %v189, 4
      %v192 = vshll.u32 %v177, 16
      %v194 = vrot.slane %v192, 5
      %v195 = vsel %vm181, %v190, %v194
      %v196 = vshrl.u32 %v177, 16
      %v198 = vrot.slane %v196, 4
      %v199 = vor.u32 %v198, %v194
      %v200 = vrot.slane %v199, 4
      %v202 = vshll.u32 %v178, 16
      %v204 = vrot.slane %v202, 5
      %v205 = vsel %vm181, %v200, %v204
      %208 = vst [vmem:[#allocation2 + $0x4] sm:$0xf] %v195
      %209 = vst [vmem:[#allocation2 + $0x20] sm:$0xf] %v205
      %v210 = vld [vmem:[%s165] sm:$0xe]
      %v211 = vld [vmem:[%s165 + $0x4] sm:$0xf]
      %v212 = vld [vmem:[%s165 + $0x8] sm:$0x1]
      %vm216 = vcmask 1042432
      %vm217 = vcmask 1046532
      %vm218 = vmor %vm216, %vm217
      %v219 = vrot.slane %v210, 5
      %v220 = vrot.slane %v219, 4
      %v221 = vrot.slane %v211, 5
      %v222 = vsel %vm218, %v220, %v221
      %v223 = vrot.slane %v221, 4
      %v224 = vrot.slane %v212, 5
      %v225 = vsel %vm218, %v223, %v224
      %228 = vst [vmem:[#allocation2 + $0x8] sm:$0xf] %v222
      %229 = vst [vmem:[#allocation2 + $0x24] sm:$0xf] %v225
      %v230 = vld [vmem:[%s165] sm:$0xe]
      %v231 = vld [vmem:[%s165 + $0x4] sm:$0xf]
      %v232 = vld [vmem:[%s165 + $0x8] sm:$0x3]
      %vm233 = vsmask.f32 2304
      %vm234 = vsmask.f32 6416
      %vm235 = vmor %vm233, %vm234
      %v237 = vshrl.u32 %v230, 16
      %v239 = vrot.slane %v237, 5
      %v240 = vshll.u32 %v230, 16
      %v242 = vrot.slane %v240, 6
      %v243 = vor.u32 %v239, %v242
      %v244 = vrot.slane %v243, 4
      %v246 = vshrl.u32 %v231, 16
      %v248 = vrot.slane %v246, 5
      %v249 = vshll.u32 %v231, 16
      %v251 = vrot.slane %v249, 6
      %v252 = vor.u32 %v248, %v251
      %v253 = vsel %vm235, %v244, %v252
      %v254 = vrot.slane %v252, 4
      %v256 = vshrl.u32 %v232, 16
      %v258 = vrot.slane %v256, 5
      %v259 = vshll.u32 %v232, 16
      %v261 = vrot.slane %v259, 6
      %v262 = vor.u32 %v258, %v261
      %v263 = vsel %vm235, %v254, %v262
      %266 = vst [vmem:[#allocation2 + $0xc] sm:$0xf] %v253
      %267 = vst [vmem:[#allocation2 + $0x28] sm:$0xf] %v263
      %v268 = vld [vmem:[%s165] sm:$0xc]
      %v269 = vld [vmem:[%s165 + $0x4] sm:$0xf]
      %v270 = vld [vmem:[%s165 + $0x8] sm:$0x3]
      %vm274 = vcmask 1041408
      %vm275 = vcmask 1045508
      %vm276 = vmor %vm274, %vm275
      %v277 = vrot.slane %v268, 6
      %v278 = vrot.slane %v277, 4
      %v279 = vrot.slane %v269, 6
      %v280 = vsel %vm276, %v278, %v279
      %v281 = vrot.slane %v279, 4
      %v282 = vrot.slane %v270, 6
      %v283 = vsel %vm276, %v281, %v282
      %286 = vst [vmem:[#allocation2 + $0x10] sm:$0xf] %v280
      %287 = vst [vmem:[#allocation2 + $0x2c] sm:$0xf] %v283
      %v288 = vld [vmem:[%s165] sm:$0xc]
      %v289 = vld [vmem:[%s165 + $0x4] sm:$0xf]
      %v290 = vld [vmem:[%s165 + $0x8] sm:$0x7]
      %vm291 = vsmask.f32 1280
      %vm292 = vsmask.f32 5392
      %vm293 = vmor %vm291, %vm292
      %v295 = vshrl.u32 %v288, 16
      %v297 = vrot.slane %v295, 6
      %v298 = vshll.u32 %v288, 16
      %v300 = vrot.slane %v298, 7
      %v301 = vor.u32 %v297, %v300
      %v302 = vrot.slane %v301, 4
      %v304 = vshrl.u32 %v289, 16
      %v306 = vrot.slane %v304, 6
      %v307 = vshll.u32 %v289, 16
      %v309 = vrot.slane %v307, 7
      %v310 = vor.u32 %v306, %v309
      %v311 = vsel %vm293, %v302, %v310
      %v312 = vrot.slane %v310, 4
      %v314 = vshrl.u32 %v290, 16
      %v316 = vrot.slane %v314, 6
      %v317 = vshll.u32 %v290, 16
      %v319 = vrot.slane %v317, 7
      %v320 = vor.u32 %v316, %v319
      %v321 = vsel %vm293, %v312, %v320
      %324 = vst [vmem:[#allocation2 + $0x14] sm:$0xf] %v311
      %325 = vst [vmem:[#allocation2 + $0x30] sm:$0xf] %v321
      %v326 = vld [vmem:[%s165] sm:$0x8]
      %v327 = vld [vmem:[%s165 + $0x4] sm:$0xf]
      %v328 = vld [vmem:[%s165 + $0x8] sm:$0x7]
      %vm332 = vcmask 1040384
      %vm333 = vcmask 1044484
      %vm334 = vmor %vm332, %vm333
      %v335 = vrot.slane %v326, 7
      %v336 = vrot.slane %v335, 4
      %v337 = vrot.slane %v327, 7
      %v338 = vsel %vm334, %v336, %v337
      %v339 = vrot.slane %v337, 4
      %v340 = vrot.slane %v328, 7
      %v341 = vsel %vm334, %v339, %v340
      %344 = vst [vmem:[#allocation2 + $0x18] sm:$0xf] %v338
      %345 = vst [vmem:[#allocation2 + $0x34] sm:$0xf] %v341
      %v346 = vld [vmem:[#allocation2] sm:$0xff]
      %v347 = vld [vmem:[#allocation2 + $0x8] sm:$0xff]
      %v348 = vld [vmem:[#allocation2 + $0x10] sm:$0xff]
      %v349 = vld [vmem:[#allocation2 + $0x18] sm:$0xf]
      %v350 = vld [vmem:[#allocation2 + $0x1c] sm:$0xff]
      %v351 = vld [vmem:[#allocation2 + $0x24] sm:$0xff]
      %v352 = vld [vmem:[#allocation2 + $0x2c] sm:$0xff]
      %v353 = vld [vmem:[#allocation2 + $0x34] sm:$0xf]
      %v354 = vld [vmem:[%s1] sm:$0xf]
      %v355 = vld [vmem:[%s1 + $0x4] sm:$0xf]
      %v356 = vld [vmem:[%s1 + $0x8] sm:$0xf]
      %v357 = vld [vmem:[%s1 + $0xc] sm:$0xf]
      %v358 = vld [vmem:[%s1 + $0x10] sm:$0xf]
      %v359 = vld [vmem:[%s1 + $0x14] sm:$0xf]
      %v360 = vld [vmem:[%s1 + $0x18] sm:$0xf]
      %v361 = vld [vmem:[%s1 + $0x1c] sm:$0xf]
      %v362 = vld [vmem:[%s1 + $0x20] sm:$0xf]
      %v363 = vld [vmem:[%s1 + $0x24] sm:$0xf]
      %v364 = vld [vmem:[%s1 + $0x28] sm:$0xf]
      %v365 = vld [vmem:[%s1 + $0x2c] sm:$0xf]
      %v366 = vld [vmem:[%s1 + $0x30] sm:$0xf]
      %v367 = vld [vmem:[%s1 + $0x34] sm:$0xf]
      %v368 = vld [vmem:[%s1 + $0x38] sm:$0xf]
      %v369 = vld [vmem:[%s1 + $0x3c] sm:$0xf]
      %v370 = vld [vmem:[%s1 + $0x40] sm:$0xf]
      %v371 = vld [vmem:[%s1 + $0x44] sm:$0xf]
      %v372 = vld [vmem:[%s1 + $0x48] sm:$0xf]
      %v373 = vld [vmem:[%s1 + $0x4c] sm:$0xf]
      %v374 = vld [vmem:[%s1 + $0x50] sm:$0xf]
      %v375 = vld [vmem:[%s1 + $0x54] sm:$0xf]
      %v376 = vld [vmem:[%s1 + $0x58] sm:$0xf]
      %v377 = vld [vmem:[%s1 + $0x5c] sm:$0xf]
      %v378 = vld [vmem:[%s1 + $0x60] sm:$0xf]
      %v379 = vld [vmem:[%s1 + $0x64] sm:$0xf]
      %v380 = vld [vmem:[%s1 + $0x68] sm:$0xf]
      %v381 = vld [vmem:[%s1 + $0x6c] sm:$0xf]
      %v382 = vld [vmem:[%s1 + $0x70] sm:$0xf]
      %v383 = vld [vmem:[%s1 + $0x74] sm:$0xf]
      %v384 = vld [vmem:[%s1 + $0x78] sm:$0xf]
      %v385 = vld [vmem:[%s1 + $0x7c] sm:$0xf]
      %v386 = vld [vmem:[%s1 + $0x80] sm:$0xf]
      %v387 = vld [vmem:[%s1 + $0x84] sm:$0xf]
      %v388 = vld [vmem:[%s1 + $0x88] sm:$0xf]
      %v389 = vld [vmem:[%s1 + $0x8c] sm:$0xf]
      %v390 = vld [vmem:[%s1 + $0x90] sm:$0xf]
      %v391 = vld [vmem:[%s1 + $0x94] sm:$0xf]
      %v392 = vld [vmem:[%s1 + $0x98] sm:$0xf]
      %v393 = vld [vmem:[%s1 + $0x9c] sm:$0xf]
      %v394 = vld [vmem:[%s1 + $0xa0] sm:$0xf]
      %v395 = vld [vmem:[%s1 + $0xa4] sm:$0xf]
      %v396 = vld [vmem:[%s1 + $0xa8] sm:$0xf]
      %v397 = vld [vmem:[%s1 + $0xac] sm:$0xf]
      %v398 = vld [vmem:[%s1 + $0xb0] sm:$0xf]
      %v399 = vld [vmem:[%s1 + $0xb4] sm:$0xf]
      %v400 = vld [vmem:[%s1 + $0xb8] sm:$0xf]
      %v401 = vld [vmem:[%s1 + $0xbc] sm:$0xf]
      %v402 = vld [vmem:[%s1 + $0xc0] sm:$0xf]
      %v403 = vld [vmem:[%s1 + $0xc4] sm:$0xf]
      %v404 = vld [vmem:[%s1 + $0xc8] sm:$0xf]
      %v405 = vld [vmem:[%s1 + $0xcc] sm:$0xf]
      %v406 = vld [vmem:[%s1 + $0xd0] sm:$0xf]
      %v407 = vld [vmem:[%s1 + $0xd4] sm:$0xf]
      %v408 = vld [vmem:[%s1 + $0xd8] sm:$0xf]
      %v409 = vld [vmem:[%s1 + $0xdc] sm:$0xf]
      %v410 = vld [vmem:[%s1 + $0xe0] sm:$0xf]
      %v411 = vld [vmem:[%s1 + $0xe4] sm:$0xf]
      %v412 = vld [vmem:[%s1 + $0xe8] sm:$0xf]
      %v413 = vld [vmem:[%s1 + $0xec] sm:$0xf]
      %v414 = vld [vmem:[%s1 + $0xf0] sm:$0xf]
      %v415 = vld [vmem:[%s1 + $0xf4] sm:$0xf]
      %v416 = vld [vmem:[%s1 + $0xf8] sm:$0xf]
      %v417 = vld [vmem:[%s1 + $0xfc] sm:$0xf]
      %v418 = vld [vmem:[%s1 + $0x100] sm:$0xf]
      %v419 = vld [vmem:[%s1 + $0x104] sm:$0xf]
      %v420 = vld [vmem:[%s1 + $0x108] sm:$0xf]
      %v421 = vld [vmem:[%s1 + $0x10c] sm:$0xf]
      %v422 = vld [vmem:[%s1 + $0x110] sm:$0xf]
      %v423 = vld [vmem:[%s1 + $0x114] sm:$0xf]
      %v424 = vld [vmem:[%s1 + $0x118] sm:$0xf]
      %v425 = vld [vmem:[%s1 + $0x11c] sm:$0xf]
      %v426 = vld [vmem:[%s1 + $0x120] sm:$0xf]
      %v427 = vld [vmem:[%s1 + $0x124] sm:$0xf]
      %v428 = vld [vmem:[%s1 + $0x128] sm:$0xf]
      %v429 = vld [vmem:[%s1 + $0x12c] sm:$0xf]
      %v430 = vld [vmem:[%s1 + $0x130] sm:$0xf]
      %v431 = vld [vmem:[%s1 + $0x134] sm:$0xf]
      %v432 = vld [vmem:[%s1 + $0x138] sm:$0xf]
      %v433 = vld [vmem:[%s1 + $0x13c] sm:$0xf]
      %v434 = vld [vmem:[%s1 + $0x140] sm:$0xf]
      %v435 = vld [vmem:[%s1 + $0x144] sm:$0xf]
      %v436 = vld [vmem:[%s1 + $0x148] sm:$0xf]
      %v437 = vld [vmem:[%s1 + $0x14c] sm:$0xf]
      %v438 = vld [vmem:[%s1 + $0x150] sm:$0xf]
      %v439 = vld [vmem:[%s1 + $0x154] sm:$0xf]
      %v440 = vld [vmem:[%s1 + $0x158] sm:$0xf]
      %v441 = vld [vmem:[%s1 + $0x15c] sm:$0xf]
      %v442 = vld [vmem:[%s1 + $0x160] sm:$0xf]
      %v443 = vld [vmem:[%s1 + $0x164] sm:$0xf]
      %v444 = vld [vmem:[%s1 + $0x168] sm:$0xf]
      %v445 = vld [vmem:[%s1 + $0x16c] sm:$0xf]
      %v446 = vld [vmem:[%s1 + $0x170] sm:$0xf]
      %v447 = vld [vmem:[%s1 + $0x174] sm:$0xf]
      %v448 = vld [vmem:[%s1 + $0x178] sm:$0xf]
      %v449 = vld [vmem:[%s1 + $0x17c] sm:$0xf]
      %v450 = vld [vmem:[%s1 + $0x180] sm:$0xf]
      %v451 = vld [vmem:[%s1 + $0x184] sm:$0xf]
      %v452 = vld [vmem:[%s1 + $0x188] sm:$0xf]
      %v453 = vld [vmem:[%s1 + $0x18c] sm:$0xf]
      %v454 = vld [vmem:[%s1 + $0x190] sm:$0xf]
      %v455 = vld [vmem:[%s1 + $0x194] sm:$0xf]
      %v456 = vld [vmem:[%s1 + $0x198] sm:$0xf]
      %v457 = vld [vmem:[%s1 + $0x19c] sm:$0xf]
      %v458 = vld [vmem:[%s1 + $0x1a0] sm:$0xf]
      %v459 = vld [vmem:[%s1 + $0x1a4] sm:$0xf]
      %v460 = vld [vmem:[%s1 + $0x1a8] sm:$0xf]
      %v461 = vld [vmem:[%s1 + $0x1ac] sm:$0xf]
      %v462 = vld [vmem:[%s1 + $0x1b0] sm:$0xf]
      %v463 = vld [vmem:[%s1 + $0x1b4] sm:$0xf]
      %v464 = vld [vmem:[%s1 + $0x1b8] sm:$0xf]
      %v465 = vld [vmem:[%s1 + $0x1bc] sm:$0xf]
      %v466 = vld [vmem:[%s2] sm:$0x1]
      %v468 = vlaneseq
      %v469 = vshrl.u32 %v468, 7
      %v470 = vsub.s32 0, %v469
      %v471 = vrot.slane %v466, %v470
      %v481 = vunpack.c.l.b16 %v346
      %v482 = vunpack.c.h.b16 %v346
      %v483 = vunpack.c.l.b16 %v347
      %v484 = vunpack.c.h.b16 %v347
      %v485 = vunpack.c.l.b16 %v348
      %v486 = vunpack.c.h.b16 %v348
      %v487 = vunpack.c.l.b16 %v349
      %v488 = vunpack.c.l.b16 %v350
      %v489 = vunpack.c.h.b16 %v350
      %v490 = vunpack.c.l.b16 %v351
      %v491 = vunpack.c.h.b16 %v351
      %v492 = vunpack.c.l.b16 %v352
      %v493 = vunpack.c.h.b16 %v352
      %v494 = vunpack.c.l.b16 %v353
      %v495 = vpack.c.b16 %v488, %v481
      %v496 = vpack.c.b16 %v489, %v482
      %v497 = vpack.c.b16 %v490, %v483
      %v498 = vpack.c.b16 %v491, %v484
      %v499 = vpack.c.b16 %v492, %v485
      %v500 = vpack.c.b16 %v493, %v486
      %v501 = vpack.c.b16 %v494, %v487
      %v621 = vunpack.c.l.b16 %v354
      %v622 = vunpack.c.l.b16 %v355
      %v623 = vunpack.c.l.b16 %v356
      %v624 = vunpack.c.l.b16 %v357
      %v625 = vunpack.c.l.b16 %v358
      %v626 = vunpack.c.l.b16 %v359
      %v627 = vunpack.c.l.b16 %v360
      %v628 = vunpack.c.l.b16 %v361
      %v629 = vunpack.c.l.b16 %v362
      %v630 = vunpack.c.l.b16 %v363
      %v631 = vunpack.c.l.b16 %v364
      %v632 = vunpack.c.l.b16 %v365
      %v633 = vunpack.c.l.b16 %v366
      %v634 = vunpack.c.l.b16 %v367
      %v635 = vunpack.c.l.b16 %v368
      %v636 = vunpack.c.l.b16 %v369
      %v637 = vunpack.c.l.b16 %v370
      %v638 = vunpack.c.l.b16 %v371
      %v639 = vunpack.c.l.b16 %v372
      %v640 = vunpack.c.l.b16 %v373
      %v641 = vunpack.c.l.b16 %v374
      %v642 = vunpack.c.l.b16 %v375
      %v643 = vunpack.c.l.b16 %v376
      %v644 = vunpack.c.l.b16 %v377
      %v645 = vunpack.c.l.b16 %v378
      %v646 = vunpack.c.l.b16 %v379
      %v647 = vunpack.c.l.b16 %v380
      %v648 = vunpack.c.l.b16 %v381
      %v649 = vunpack.c.l.b16 %v382
      %v650 = vunpack.c.l.b16 %v383
      %v651 = vunpack.c.l.b16 %v384
      %v652 = vunpack.c.l.b16 %v385
      %v653 = vunpack.c.l.b16 %v386
      %v654 = vunpack.c.l.b16 %v387
      %v655 = vunpack.c.l.b16 %v388
      %v656 = vunpack.c.l.b16 %v389
      %v657 = vunpack.c.l.b16 %v390
      %v658 = vunpack.c.l.b16 %v391
      %v659 = vunpack.c.l.b16 %v392
      %v660 = vunpack.c.l.b16 %v393
      %v661 = vunpack.c.l.b16 %v394
      %v662 = vunpack.c.l.b16 %v395
      %v663 = vunpack.c.l.b16 %v396
      %v664 = vunpack.c.l.b16 %v397
      %v665 = vunpack.c.l.b16 %v398
      %v666 = vunpack.c.l.b16 %v399
      %v667 = vunpack.c.l.b16 %v400
      %v668 = vunpack.c.l.b16 %v401
      %v669 = vunpack.c.l.b16 %v402
      %v670 = vunpack.c.l.b16 %v403
      %v671 = vunpack.c.l.b16 %v404
      %v672 = vunpack.c.l.b16 %v405
      %v673 = vunpack.c.l.b16 %v406
      %v674 = vunpack.c.l.b16 %v407
      %v675 = vunpack.c.l.b16 %v408
      %v676 = vunpack.c.l.b16 %v409
      %v677 = vunpack.c.l.b16 %v410
      %v678 = vunpack.c.l.b16 %v411
      %v679 = vunpack.c.l.b16 %v412
      %v680 = vunpack.c.l.b16 %v413
      %v681 = vunpack.c.l.b16 %v414
      %v682 = vunpack.c.l.b16 %v415
      %v683 = vunpack.c.l.b16 %v416
      %v684 = vunpack.c.l.b16 %v417
      %v685 = vunpack.c.l.b16 %v418
      %v686 = vunpack.c.l.b16 %v419
      %v687 = vunpack.c.l.b16 %v420
      %v688 = vunpack.c.l.b16 %v421
      %v689 = vunpack.c.l.b16 %v422
      %v690 = vunpack.c.l.b16 %v423
      %v691 = vunpack.c.l.b16 %v424
      %v692 = vunpack.c.l.b16 %v425
      %v693 = vunpack.c.l.b16 %v426
      %v694 = vunpack.c.l.b16 %v427
      %v695 = vunpack.c.l.b16 %v428
      %v696 = vunpack.c.l.b16 %v429
      %v697 = vunpack.c.l.b16 %v430
      %v698 = vunpack.c.l.b16 %v431
      %v699 = vunpack.c.l.b16 %v432
      %v700 = vunpack.c.l.b16 %v433
      %v701 = vunpack.c.l.b16 %v434
      %v702 = vunpack.c.l.b16 %v435
      %v703 = vunpack.c.l.b16 %v436
      %v704 = vunpack.c.l.b16 %v437
      %v705 = vunpack.c.l.b16 %v438
      %v706 = vunpack.c.l.b16 %v439
      %v707 = vunpack.c.l.b16 %v440
      %v708 = vunpack.c.l.b16 %v441
      %v709 = vunpack.c.l.b16 %v442
      %v710 = vunpack.c.l.b16 %v443
      %v711 = vunpack.c.l.b16 %v444
      %v712 = vunpack.c.l.b16 %v445
      %v713 = vunpack.c.l.b16 %v446
      %v714 = vunpack.c.l.b16 %v447
      %v715 = vunpack.c.l.b16 %v448
      %v716 = vunpack.c.l.b16 %v449
      %v717 = vunpack.c.l.b16 %v450
      %v718 = vunpack.c.l.b16 %v451
      %v719 = vunpack.c.l.b16 %v452
      %v720 = vunpack.c.l.b16 %v453
      %v721 = vunpack.c.l.b16 %v454
      %v722 = vunpack.c.l.b16 %v455
      %v723 = vunpack.c.l.b16 %v456
      %v724 = vunpack.c.l.b16 %v457
      %v725 = vunpack.c.l.b16 %v458
      %v726 = vunpack.c.l.b16 %v459
      %v727 = vunpack.c.l.b16 %v460
      %v728 = vunpack.c.l.b16 %v461
      %v729 = vunpack.c.l.b16 %v462
      %v730 = vunpack.c.l.b16 %v463
      %v731 = vunpack.c.l.b16 %v464
      %v732 = vunpack.c.l.b16 %v465
      %v733 = vpack.c.b16 %v622, %v621
      %v734 = vpack.c.b16 %v624, %v623
      %v735 = vpack.c.b16 %v626, %v625
      %v736 = vpack.c.b16 %v628, %v627
      %v737 = vpack.c.b16 %v630, %v629
      %v738 = vpack.c.b16 %v632, %v631
      %v739 = vpack.c.b16 %v634, %v633
      %v740 = vpack.c.b16 %v636, %v635
      %v741 = vpack.c.b16 %v638, %v637
      %v742 = vpack.c.b16 %v640, %v639
      %v743 = vpack.c.b16 %v642, %v641
      %v744 = vpack.c.b16 %v644, %v643
      %v745 = vpack.c.b16 %v646, %v645
      %v746 = vpack.c.b16 %v648, %v647
      %v747 = vpack.c.b16 %v650, %v649
      %v748 = vpack.c.b16 %v652, %v651
      %v749 = vpack.c.b16 %v654, %v653
      %v750 = vpack.c.b16 %v656, %v655
      %v751 = vpack.c.b16 %v658, %v657
      %v752 = vpack.c.b16 %v660, %v659
      %v753 = vpack.c.b16 %v662, %v661
      %v754 = vpack.c.b16 %v664, %v663
      %v755 = vpack.c.b16 %v666, %v665
      %v756 = vpack.c.b16 %v668, %v667
      %v757 = vpack.c.b16 %v670, %v669
      %v758 = vpack.c.b16 %v672, %v671
      %v759 = vpack.c.b16 %v674, %v673
      %v760 = vpack.c.b16 %v676, %v675
      %v761 = vpack.c.b16 %v678, %v677
      %v762 = vpack.c.b16 %v680, %v679
      %v763 = vpack.c.b16 %v682, %v681
      %v764 = vpack.c.b16 %v684, %v683
      %v765 = vpack.c.b16 %v686, %v685
      %v766 = vpack.c.b16 %v688, %v687
      %v767 = vpack.c.b16 %v690, %v689
      %v768 = vpack.c.b16 %v692, %v691
      %v769 = vpack.c.b16 %v694, %v693
      %v770 = vpack.c.b16 %v696, %v695
      %v771 = vpack.c.b16 %v698, %v697
      %v772 = vpack.c.b16 %v700, %v699
      %v773 = vpack.c.b16 %v702, %v701
      %v774 = vpack.c.b16 %v704, %v703
      %v775 = vpack.c.b16 %v706, %v705
      %v776 = vpack.c.b16 %v708, %v707
      %v777 = vpack.c.b16 %v710, %v709
      %v778 = vpack.c.b16 %v712, %v711
      %v779 = vpack.c.b16 %v714, %v713
      %v780 = vpack.c.b16 %v716, %v715
      %v781 = vpack.c.b16 %v718, %v717
      %v782 = vpack.c.b16 %v720, %v719
      %v783 = vpack.c.b16 %v722, %v721
      %v784 = vpack.c.b16 %v724, %v723
      %v785 = vpack.c.b16 %v726, %v725
      %v786 = vpack.c.b16 %v728, %v727
      %v787 = vpack.c.b16 %v730, %v729
      %v788 = vpack.c.b16 %v732, %v731
      %845 = vmatprep.subr.bf16.mxu0 0
      %846 = vmatpush1.bf16.msra.mxu0 %v740
      %847 = vmatprep.subr.bf16.mxu0 0
      %848 = vmatpush1.bf16.msra.mxu0 %v739
      %849 = vmatprep.subr.bf16.mxu0 0
      %850 = vmatpush1.bf16.msra.mxu0 %v738
      %851 = vmatprep.subr.bf16.mxu0 0
      %852 = vmatpush1.bf16.msra.mxu0 %v737
      %853 = vmatprep.subr.bf16.mxu0 0
      %854 = vmatpush1.bf16.msra.mxu0 %v736
      %855 = vmatprep.subr.bf16.mxu0 0
      %856 = vmatpush1.bf16.msra.mxu0 %v735
      %857 = vmatprep.subr.bf16.mxu0 0
      %858 = vmatpush1.bf16.msra.mxu0 %v734
      %859 = vmatprep.subr.bf16.mxu0 0
      %860 = vmatpush1.bf16.msra.mxu0 %v733
      %861 = vmatprep.subr.bf16.mxu0 0
      %862 = vmatpush2.bf16.msra.mxu0 %v748
      %863 = vmatprep.subr.bf16.mxu0 0
      %864 = vmatpush2.bf16.msra.mxu0 %v747
      %865 = vmatprep.subr.bf16.mxu0 0
      %866 = vmatpush2.bf16.msra.mxu0 %v746
      %867 = vmatprep.subr.bf16.mxu0 0
      %868 = vmatpush2.bf16.msra.mxu0 %v745
      %869 = vmatprep.subr.bf16.mxu0 0
      %870 = vmatpush2.bf16.msra.mxu0 %v744
      %871 = vmatprep.subr.bf16.mxu0 0
      %872 = vmatpush2.bf16.msra.mxu0 %v743
      %873 = vmatprep.subr.bf16.mxu0 0
      %874 = vmatpush2.bf16.msra.mxu0 %v742
      %875 = vmatprep.subr.bf16.mxu0 0
      %876 = vmatpush2.bf16.msra.mxu0 %v741
      %877 = vmatprep.mubr.bf16.mxu0 %v496
      %878 = vmatmul.mubr.bf16.gmra.mxu0 %v495
      %v879 = vpop.f32.mrf.mxu0
      %v880 = vadd.f32 %v471, %v879
      %v881 = vpop.f32.mrf.mxu0
      %v882 = vpop.f32.mrf.mxu0
      %v883 = vadd.f32 %v471, %v882
      %v884 = vpop.f32.mrf.mxu0
      %885 = vdwg.mxu0
      %886 = vmatprep.subr.bf16.mxu0 0
      %887 = vmatpush1.bf16.msra.mxu0 %v756
      %888 = vmatprep.subr.bf16.mxu0 0
      %889 = vmatpush1.bf16.msra.mxu0 %v755
      %890 = vmatprep.subr.bf16.mxu0 0
      %891 = vmatpush1.bf16.msra.mxu0 %v754
      %892 = vmatprep.subr.bf16.mxu0 0
      %893 = vmatpush1.bf16.msra.mxu0 %v753
      %894 = vmatprep.subr.bf16.mxu0 0
      %895 = vmatpush1.bf16.msra.mxu0 %v752
      %896 = vmatprep.subr.bf16.mxu0 0
      %897 = vmatpush1.bf16.msra.mxu0 %v751
      %898 = vmatprep.subr.bf16.mxu0 0
      %899 = vmatpush1.bf16.msra.mxu0 %v750
      %900 = vmatprep.subr.bf16.mxu0 0
      %901 = vmatpush1.bf16.msra.mxu0 %v749
      %902 = vmatprep.subr.bf16.mxu0 0
      %903 = vmatpush2.bf16.msra.mxu0 %v764
      %904 = vmatprep.subr.bf16.mxu0 0
      %905 = vmatpush2.bf16.msra.mxu0 %v763
      %906 = vmatprep.subr.bf16.mxu0 0
      %907 = vmatpush2.bf16.msra.mxu0 %v762
      %908 = vmatprep.subr.bf16.mxu0 0
      %909 = vmatpush2.bf16.msra.mxu0 %v761
      %910 = vmatprep.subr.bf16.mxu0 0
      %911 = vmatpush2.bf16.msra.mxu0 %v760
      %912 = vmatprep.subr.bf16.mxu0 0
      %913 = vmatpush2.bf16.msra.mxu0 %v759
      %914 = vmatprep.subr.bf16.mxu0 0
      %915 = vmatpush2.bf16.msra.mxu0 %v758
      %916 = vmatprep.subr.bf16.mxu0 0
      %917 = vmatpush2.bf16.msra.mxu0 %v757
      %918 = vmatprep.mubr.bf16.mxu0 %v498
      %919 = vmatmul.mubr.bf16.gmra.mxu0 %v497
      %v920 = vpop.f32.mrf.mxu0
      %v921 = vadd.f32 %v880, %v920
      %v922 = vpop.f32.mrf.mxu0
      %v923 = vpop.f32.mrf.mxu0
      %v924 = vadd.f32 %v883, %v923
      %v925 = vpop.f32.mrf.mxu0
      %926 = vdwg.mxu0
      %927 = vmatprep.subr.bf16.mxu0 0
      %928 = vmatpush1.bf16.msra.mxu0 %v772
      %929 = vmatprep.subr.bf16.mxu0 0
      %930 = vmatpush1.bf16.msra.mxu0 %v771
      %931 = vmatprep.subr.bf16.mxu0 0
      %932 = vmatpush1.bf16.msra.mxu0 %v770
      %933 = vmatprep.subr.bf16.mxu0 0
      %934 = vmatpush1.bf16.msra.mxu0 %v769
      %935 = vmatprep.subr.bf16.mxu0 0
      %936 = vmatpush1.bf16.msra.mxu0 %v768
      %937 = vmatprep.subr.bf16.mxu0 0
      %938 = vmatpush1.bf16.msra.mxu0 %v767
      %939 = vmatprep.subr.bf16.mxu0 0
      %940 = vmatpush1.bf16.msra.mxu0 %v766
      %941 = vmatprep.subr.bf16.mxu0 0
      %942 = vmatpush1.bf16.msra.mxu0 %v765
      %943 = vmatprep.subr.bf16.mxu0 0
      %944 = vmatpush2.bf16.msra.mxu0 %v780
      %945 = vmatprep.subr.bf16.mxu0 0
      %946 = vmatpush2.bf16.msra.mxu0 %v779
      %947 = vmatprep.subr.bf16.mxu0 0
      %948 = vmatpush2.bf16.msra.mxu0 %v778
      %949 = vmatprep.subr.bf16.mxu0 0
      %950 = vmatpush2.bf16.msra.mxu0 %v777
      %951 = vmatprep.subr.bf16.mxu0 0
      %952 = vmatpush2.bf16.msra.mxu0 %v776
      %953 = vmatprep.subr.bf16.mxu0 0
      %954 = vmatpush2.bf16.msra.mxu0 %v775
      %955 = vmatprep.subr.bf16.mxu0 0
      %956 = vmatpush2.bf16.msra.mxu0 %v774
      %957 = vmatprep.subr.bf16.mxu0 0
      %958 = vmatpush2.bf16.msra.mxu0 %v773
      %959 = vmatprep.mubr.bf16.mxu0 %v500
      %960 = vmatmul.mubr.bf16.gmra.mxu0 %v499
      %v961 = vpop.f32.mrf.mxu0
      %v962 = vadd.f32 %v921, %v961
      %v963 = vpop.f32.mrf.mxu0
      %v964 = vpop.f32.mrf.mxu0
      %v965 = vadd.f32 %v924, %v964
      %v966 = vpop.f32.mrf.mxu0
      %967 = vdwg.mxu0
      %968 = vmatprep.subr.bf16.mxu0 0
      %969 = vmatpush1.bf16.msra.mxu0 %v788
      %970 = vmatprep.subr.bf16.mxu0 0
      %971 = vmatpush1.bf16.msra.mxu0 %v787
      %972 = vmatprep.subr.bf16.mxu0 0
      %973 = vmatpush1.bf16.msra.mxu0 %v786
      %974 = vmatprep.subr.bf16.mxu0 0
      %975 = vmatpush1.bf16.msra.mxu0 %v785
      %976 = vmatprep.subr.bf16.mxu0 0
      %977 = vmatpush1.bf16.msra.mxu0 %v784
      %978 = vmatprep.subr.bf16.mxu0 0
      %979 = vmatpush1.bf16.msra.mxu0 %v783
      %980 = vmatprep.subr.bf16.mxu0 0
      %981 = vmatpush1.bf16.msra.mxu0 %v782
      %982 = vmatprep.subr.bf16.mxu0 0
      %983 = vmatpush1.bf16.msra.mxu0 %v781
      %984 = vmatprep.subr.bf16.mxu0 0
      %985 = vmatpush2.bf16.msra.mxu0 0
      %986 = vmatprep.subr.bf16.mxu0 0
      %987 = vmatpush2.bf16.msra.mxu0 0
      %988 = vmatprep.subr.bf16.mxu0 0
      %989 = vmatpush2.bf16.msra.mxu0 0
      %990 = vmatprep.subr.bf16.mxu0 0
      %991 = vmatpush2.bf16.msra.mxu0 0
      %992 = vmatprep.subr.bf16.mxu0 0
      %993 = vmatpush2.bf16.msra.mxu0 0
      %994 = vmatprep.subr.bf16.mxu0 0
      %995 = vmatpush2.bf16.msra.mxu0 0
      %996 = vmatprep.subr.bf16.mxu0 0
      %997 = vmatpush2.bf16.msra.mxu0 0
      %998 = vmatprep.subr.bf16.mxu0 0
      %999 = vmatpush2.bf16.msra.mxu0 0
      %1000 = vmatprep.mubr.bf16.mxu0 0
      %1001 = vmatmul.mubr.bf16.gmra.mxu0 %v501
      %v1002 = vpop.f32.mrf.mxu0
      %v1003 = vadd.f32 %v962, %v1002
      %v1004 = vpop.f32.mrf.mxu0
      %v1005 = vpop.f32.mrf.mxu0
      %v1006 = vadd.f32 %v965, %v1005
      %v1007 = vpop.f32.mrf.mxu0
      %1008 = vdwg.mxu0
      %v1009 = vpack.c.bf16 %v1006, %v1003
      %v1011 = vunpack.c.l.b16 %v1009
      %v1012 = vunpack.c.h.b16 %v1009
      %v1013 = vpack.c.b16 %v1011, %v1011
      %v1014 = vpack.c.b16 %v1012, %v1012
      %1017 = vst [vmem:[%s170] sm:$0xf] %v1013
      %1018 = vst [vmem:[%s170 + $0x4] sm:$0xf] %v1014
      %p1019 = scmp.lt.s32.totalorder %s14, 1
      %s1020 = scalar_select %p1019, %s14, 1
      %s1021 = smul.addr %s1020, 2
      %s1022 = smul.addr %s1021, 4
      %s1023 = scalar_lea.vmem %s3, %s1022
      // Predicated region
      $region33: #{mixconv2d_forward.1} parent=31 // pred_check
        %p1024 = pneg %p100
      $region34: #{mixconv2d_forward.1} parent=31 // pred_check_branch
        %1026 = sbr.rel (%p1024) target = $region36
      $region35: #{mixconv2d_forward.1} parent=31 // pred_region
        _
      $region36: #{mixconv2d_forward.1} parent=31 // pred_fallthru
        _
    $region32: #{mixconv2d_forward.1} parent=5 // pred_fallthru
      _
    %p1027 = scmp.le.s32.totalorder 2, %s9
    // Predicated region
    $region37: #{mixconv2d_forward.1} parent=5 // pred_check
      %p1028 = pneg %p1027
    $region38: #{mixconv2d_forward.1} parent=5 // pred_check_branch
      %1030 = sbr.rel (%p1028) target = $region40
    $region39: #{mixconv2d_forward.1} parent=5 // pred_region
      %s1031 = ssub.s32 %s9, 2
      // Predicated region
      $region41: #{mixconv2d_forward.1} parent=39 // pred_check
        %p1032 = pneg %p106
      $region42: #{mixconv2d_forward.1} parent=39 // pred_check_branch
        %1034 = sbr.rel (%p1032) target = $region44
      $region43: #{mixconv2d_forward.1} parent=39 // pred_region
        %p1035 = scmp.lt.s32.totalorder %s15, 1
        %s1036 = scalar_select %p1035, %s15, 1
        %s1037 = smul.addr %s1036, 2
        %s1038 = smul.addr %s1037, 4
        %s1039 = scalar_lea.vmem %s3, %s1038
      $region44: #{mixconv2d_forward.1} parent=39 // pred_fallthru
        _
    $region40: #{mixconv2d_forward.1} parent=5 // pred_fallthru
      _
  $region6: #{mixconv2d_forward.1} parent=0 // loop_footer
    %s13 = sadd.s32 1, %s9
  $region7: #{mixconv2d_forward.1} parent=0 // loop_footer_branch
    %8 = sbr.rel target = $region3
  $region8: #{mixconv2d_forward.1} parent=0 // loop_exit
    _

</llo_original>
